<compile_context>
chip_gen: v6e
topology: v6e:2x2x1
jax: 0.10.0
libtpu: 0.0.40
codegen_flags: <defaults>
</compile_context>

<pallas_src>
import functools

import jax
import jax.numpy as jnp
from jax.experimental import pallas as pl
from jax.experimental.pallas import tpu as pltpu


def _round_up(x, m):
    return (x + m - 1) // m * m


# --------------------------------------------------------------------------
# Kernel
# --------------------------------------------------------------------------
def critic_kernel(x_ref, p_ref, out_ref, *, in_pad, h1x2_pad, h2_pad,
                  vec_row, w3_row, b3_row, tm):
    """x_ref: [tm, in_pad] fused (obs|act, zero-padded) rows.
    p_ref: packed parameter slab (see pack_params).
    out_ref: [tm//128, 128] lane-packed q values (batch b -> (b//128, b%128))."""
    x = x_ref[...]                                              # [tm, in_pad]

    # Static, sublane-aligned slices into the parameter slab.
    w1 = p_ref[pl.ds(0, in_pad), pl.ds(0, h1x2_pad)]            # [in_pad, h1x2_pad]
    w2 = p_ref[pl.ds(in_pad, h1x2_pad), pl.ds(0, h2_pad)]       # [h1x2_pad, h2_pad]
    b1 = p_ref[pl.ds(vec_row + 0, 1), pl.ds(0, h1x2_pad)]       # [1, h1x2_pad]
    b2 = p_ref[pl.ds(vec_row + 1, 1), pl.ds(0, h2_pad)]         # [1, h2_pad]
    b3 = p_ref[pl.ds(b3_row, 1), pl.ds(0, 1)]                   # [1, 1]
    w3 = p_ref[pl.ds(w3_row, 8), pl.ds(0, h2_pad)]              # [8, h2_pad] (row 0 = w3, rest 0)

    # Fused fc_s + fc_a: block-diagonal W1 gives [obs@Ws | act@Wa] directly.
    h = jnp.dot(x, w1, preferred_element_type=jnp.float32)      # [tm, h1x2_pad]
    h = jnp.maximum(h + b1, 0.0)

    # fc_q
    q = jnp.dot(h, w2, preferred_element_type=jnp.float32)      # [tm, h2_pad]
    q = jnp.maximum(q + b2, 0.0)

    # fc_3 as an MXU "A @ B^T" push per 128-row sub-block: result row 0 holds
    # the 128 per-batch q values laid out across lanes (lane-packed output).
    nb = tm // 128
    rows = []
    for r in range(nb):                                         # static unroll (nb <= 4)
        qr = q[r * 128:(r + 1) * 128, :]                        # [128, h2_pad]
        pr = jax.lax.dot_general(
            w3, qr, (((1,), (1,)), ((), ())),
            preferred_element_type=jnp.float32)                 # [8, 128]; only row 0 live
        rows.append(pr[0:1, :])
    packed = rows[0] if nb == 1 else jnp.concatenate(rows, axis=0)   # [nb, 128]
    out_ref[...] = (packed + b3).astype(out_ref.dtype)


# --------------------------------------------------------------------------
# Parameter packing (wrapper-side, fused under jit)
# --------------------------------------------------------------------------
def pack_params(params, obs_dim, act_dim):
    """Pack all Critic parameters into one f32 slab.

    Layout (width = max(h1x2_pad, h2_pad), a multiple of 128):
      rows [0, in_pad)                     : block-diag W1  ([Ws | 0; 0 | Wa])
      rows [in_pad, in_pad + h1x2_pad)     : Wq
      row  vec_row + 0                     : [bs | ba]
      row  vec_row + 1                     : bq
      row  vec_row + 2, col 0              : b3
      rows [w3_row, w3_row + 8)            : row 0 = w3, rows 1..7 zero
    """
    ws, bs, wa, ba, wq, bq, w3, b3 = params
    h1 = ws.shape[1]
    h2 = wq.shape[1]
    in_dim = obs_dim + act_dim
    in_pad = _round_up(in_dim, 8)
    h1x2 = 2 * h1
    h1x2_pad = _round_up(h1x2, 128)   # lane-aligned hidden extents
    h2_pad = _round_up(h2, 128)
    vec_row = in_pad + h1x2_pad       # multiple of 8
    w3_row = vec_row + 8              # sublane-aligned 8-row block for w3
    rows = w3_row + 8
    width = max(h1x2_pad, h2_pad)

    P = jnp.zeros((rows, width), jnp.float32)
    P = P.at[:obs_dim, :h1].set(ws)
    P = P.at[obs_dim:in_dim, h1:h1x2].set(wa)
    P = P.at[in_pad:in_pad + h1x2, :h2].set(wq)
    P = P.at[vec_row + 0, :h1].set(bs.reshape(h1))
    P = P.at[vec_row + 0, h1:h1x2].set(ba.reshape(h1))
    P = P.at[vec_row + 1, :h2].set(bq.reshape(h2))
    P = P.at[vec_row + 2, 0].set(b3.reshape(()))
    P = P.at[w3_row, :h2].set(w3.reshape(h2))
    dims = dict(in_pad=in_pad, h1x2_pad=h1x2_pad, h2_pad=h2_pad,
                vec_row=vec_row, w3_row=w3_row, b3_row=vec_row + 2)
    return P, dims


# --------------------------------------------------------------------------
# Forward wrapper
# --------------------------------------------------------------------------
def _critic_forward(obs, act, params, *, block_rows=None):
    """obs: [B, obs_dim], act: [B, act_dim] -> q: [B, 1]."""
    obs = jnp.asarray(obs, jnp.float32)
    act = jnp.asarray(act, jnp.float32)
    B, obs_dim = obs.shape
    act_dim = act.shape[1]
    in_dim = obs_dim + act_dim

    P, dims = pack_params(params, obs_dim, act_dim)
    in_pad = dims["in_pad"]

    # Batch tile: multiple of 128 (required by the lane-packed output layout).
    # Default gives >=2 grid steps once B > 128 so "parallel" can use both
    # TensorCores on v7x; capped at 512 rows to bound VMEM.
    if block_rows is None:
        tm = 128 if B <= 128 else min(512, _round_up((B + 1) // 2, 128))
    else:
        tm = _round_up(int(block_rows), 128)
    b_pad = _round_up(B, tm)
    grid_steps = b_pad // tm
    nb = tm // 128

    # Fuse inputs and zero-pad feature axis + batch rows (fused under jit).
    x = jnp.concatenate([obs, act], axis=1)
    x = jnp.pad(x, ((0, b_pad - B), (0, in_pad - in_dim)))

    kernel = functools.partial(critic_kernel, tm=tm, **dims)

    out = pl.pallas_call(
        kernel,
        out_shape=jax.ShapeDtypeStruct((grid_steps, nb, 128), jnp.float32),
        grid=(grid_steps,),
        in_specs=[
            pl.BlockSpec((tm, in_pad), lambda i: (i, 0)),
            pl.BlockSpec(P.shape, lambda i: (0, 0)),      # VMEM-resident params
        ],
        out_specs=pl.BlockSpec((None, nb, 128), lambda i: (i, 0, 0)),
        compiler_params=pltpu.CompilerParams(
            dimension_semantics=("parallel",)),           # 2-TC sharding on v7x
    )(x, P)

    # Unpack lane-dense output: (g, r, c) -> batch index g*tm + r*128 + c.
    return out.reshape(b_pad, 1)[:B]


# jit so param packing / x materialization / output unpack fuse with the call.
critic_forward = jax.jit(_critic_forward, static_argnames=("block_rows",))


# --------------------------------------------------------------------------
# Init + pure-JAX reference
# --------------------------------------------------------------------------
def init_params(key, obs_dim, act_dim, hidden1, hidden2):
    """PyTorch-Linear-style init (uniform +/- 1/sqrt(fan_in)).

    Weights stored transposed [in_features, out_features]; biases [1, out]."""
    def linear(key, fan_in, fan_out):
        k1, k2 = jax.random.split(key)
        bound = 1.0 / jnp.sqrt(fan_in)
        w = jax.random.uniform(k1, (fan_in, fan_out), jnp.float32, -bound, bound)
        b = jax.random.uniform(k2, (1, fan_out), jnp.float32, -bound, bound)
        return w, b

    k_s, k_a, k_q, k_3 = jax.random.split(key, 4)
    ws, bs = linear(k_s, obs_dim, hidden1)
    wa, ba = linear(k_a, act_dim, hidden1)
    wq, bq = linear(k_q, hidden1 * 2, hidden2)
    w3, b3 = linear(k_3, hidden2, 1)
    return (ws, bs, wa, ba, wq, bq, w3, b3)


def critic_ref(obs, act, params):
    ws, bs, wa, ba, wq, bq, w3, b3 = params
    h1 = jnp.maximum(obs @ ws + bs, 0.0)
    h2 = jnp.maximum(act @ wa + ba, 0.0)
    cat = jnp.concatenate([h1, h2], axis=1)
    q = jnp.maximum(cat @ wq + bq, 0.0)
    return q @ w3 + b3


if __name__ == "__main__":
    # Small shapes consistent with a DDPG critic on a simple env.
    batch = 8
    obs_dim = 16     # env.observation_space.shape[0]
    act_dim = 4      # env.action_space.shape[0]
    hidden1 = 32
    hidden2 = 32

    key = jax.random.PRNGKey(0)
    k_obs, k_act, k_params = jax.random.split(key, 3)
    obs = jax.random.normal(k_obs, (batch, obs_dim), jnp.float32)
    act = jax.random.normal(k_act, (batch, act_dim), jnp.float32)
    params = init_params(k_params, obs_dim, act_dim, hidden1, hidden2)

    q = critic_forward(obs, act, params)
    jax.block_until_ready(q)
    q_ref = critic_ref(obs, act, params)
    assert q.shape == (batch, 1), q.shape
    assert jnp.allclose(q, q_ref, atol=1e-4, rtol=1e-4), (q, q_ref)

    # Multi-step grid, default tiling (tm=256 -> 2 grid steps, nb=2 sub-blocks).
    batch2 = 260
    k2o, k2a = jax.random.split(jax.random.PRNGKey(1))
    obs2 = jax.random.normal(k2o, (batch2, obs_dim), jnp.float32)
    act2 = jax.random.normal(k2a, (batch2, act_dim), jnp.float32)
    q2 = critic_forward(obs2, act2, params)
    jax.block_until_ready(q2)
    q2_ref = critic_ref(obs2, act2, params)
    assert q2.shape == (batch2, 1), q2.shape
    assert jnp.allclose(q2, q2_ref, atol=1e-4, rtol=1e-4)

    # Explicit small tile (tm=128 -> 3 grid steps, nb=1 path).
    q3 = critic_forward(obs2, act2, params, block_rows=128)
    jax.block_until_ready(q3)
    assert q3.shape == (batch2, 1), q3.shape
    assert jnp.allclose(q3, q2_ref, atol=1e-4, rtol=1e-4)

    print("KERNEL_OK")
</pallas_src>

<mosaic_0001>
module attributes {stable_mosaic.version = 11 : i64} {
  func.func @critic_kernel(%arg0: i32, %arg1: memref<128x24xf32, #tpu.memory_space<vmem>>, %arg2: memref<168x128xf32, #tpu.memory_space<vmem>>, %arg3: memref<1x1x128xf32, #tpu.memory_space<vmem>>) attributes {dimension_semantics = [#tpu.dimension_semantics<parallel>], iteration_bounds = array<i64: 1>, scalar_prefetch = 0 : i64, scratch_operands = 0 : i64, tpu.core_type = #tpu.core_type<tc>, window_params = [{transform_indices = @transform_0, window_bounds = array<i64: 128, 24>}, {pipeline_mode = #tpu.pipeline_mode<synchronous>, transform_indices = @transform_1, window_bounds = array<i64: 168, 128>}, {transform_indices = @transform_2, window_bounds = array<i64: 1, 1, 128>}]} {
    %c0 = arith.constant 0 : index
    %c0_0 = arith.constant 0 : index
    %0 = vector.load %arg1[%c0, %c0_0] : memref<128x24xf32, #tpu.memory_space<vmem>>, vector<128x24xf32>
    %c0_1 = arith.constant 0 : index
    %c0_2 = arith.constant 0 : index
    %1 = vector.load %arg2[%c0_1, %c0_2] : memref<168x128xf32, #tpu.memory_space<vmem>>, vector<24x128xf32>
    %c24 = arith.constant 24 : index
    %c0_3 = arith.constant 0 : index
    %2 = vector.load %arg2[%c24, %c0_3] : memref<168x128xf32, #tpu.memory_space<vmem>>, vector<128x128xf32>
    %c152 = arith.constant 152 : index
    %c0_4 = arith.constant 0 : index
    %3 = vector.load %arg2[%c152, %c0_4] : memref<168x128xf32, #tpu.memory_space<vmem>>, vector<1x128xf32>
    %c153 = arith.constant 153 : index
    %c0_5 = arith.constant 0 : index
    %4 = vector.load %arg2[%c153, %c0_5] : memref<168x128xf32, #tpu.memory_space<vmem>>, vector<1x128xf32>
    %c154 = arith.constant 154 : index
    %c0_6 = arith.constant 0 : index
    %5 = vector.load %arg2[%c154, %c0_6] : memref<168x128xf32, #tpu.memory_space<vmem>>, vector<1x1xf32>
    %c160 = arith.constant 160 : index
    %c0_7 = arith.constant 0 : index
    %6 = vector.load %arg2[%c160, %c0_7] : memref<168x128xf32, #tpu.memory_space<vmem>>, vector<8x128xf32>
    %cst = arith.constant dense<0.000000e+00> : vector<128x128xf32>
    %7 = tpu.matmul %0, %1, %cst {dimension_numbers = #tpu.dot_dimension_numbers<[1], [0], [0], [1], [0, 0, 1, 1], [], []>} : vector<128x24xf32>, vector<24x128xf32>, vector<128x128xf32> -> vector<128x128xf32>
    %8 = vector.broadcast %3 : vector<1x128xf32> to vector<128x128xf32>
    %9 = arith.addf %7, %8 : vector<128x128xf32>
    %cst_8 = arith.constant 0.000000e+00 : f32
    %10 = vector.broadcast %cst_8 : f32 to vector<128x128xf32>
    %11 = arith.maximumf %9, %10 : vector<128x128xf32>
    %cst_9 = arith.constant dense<0.000000e+00> : vector<128x128xf32>
    %12 = tpu.matmul %11, %2, %cst_9 {dimension_numbers = #tpu.dot_dimension_numbers<[1], [0], [0], [1], [0, 0, 1, 1], [], []>} : vector<128x128xf32>, vector<128x128xf32>, vector<128x128xf32> -> vector<128x128xf32>
    %13 = vector.broadcast %4 : vector<1x128xf32> to vector<128x128xf32>
    %14 = arith.addf %12, %13 : vector<128x128xf32>
    %cst_10 = arith.constant 0.000000e+00 : f32
    %15 = vector.broadcast %cst_10 : f32 to vector<128x128xf32>
    %16 = arith.maximumf %14, %15 : vector<128x128xf32>
    %cst_11 = arith.constant dense<0.000000e+00> : vector<8x128xf32>
    %17 = tpu.matmul %6, %16, %cst_11 {dimension_numbers = #tpu.dot_dimension_numbers<[1], [1], [0], [0], [0, 0, 1, 0], [], []>} : vector<8x128xf32>, vector<128x128xf32>, vector<8x128xf32> -> vector<8x128xf32>
    %18 = vector.extract_strided_slice %17 {offsets = [0, 0], sizes = [1, 128], strides = [1, 1]} : vector<8x128xf32> to vector<1x128xf32>
    %19 = vector.broadcast %5 : vector<1x1xf32> to vector<1x128xf32>
    %20 = arith.addf %18, %19 : vector<1x128xf32>
    %c0_12 = arith.constant 0 : index
    %c0_13 = arith.constant 0 : index
    %c0_14 = arith.constant 0 : index
    %21 = vector.load %arg3[%c0_12, %c0_13, %c0_14] : memref<1x1x128xf32, #tpu.memory_space<vmem>>, vector<1x1x128xf32>
    %22 = vector.shape_cast %21 : vector<1x1x128xf32> to vector<1x128xf32>
    %23 = vector.shape_cast %20 : vector<1x128xf32> to vector<1x1x128xf32>
    tpu.vector_store %arg3[%c0_12, %c0_13, %c0_14], %23 {strides = array<i32>} : memref<1x1x128xf32, #tpu.memory_space<vmem>>, vector<1x1x128xf32>,
    return
  }
  func.func @transform_0(%arg0: i32) -> (i32, i32) {
    %c0_i32 = arith.constant 0 : i32
    %c0_i32_0 = arith.constant 0 : i32
    return %arg0, %c0_i32 : i32, i32
  }
  func.func @transform_1(%arg0: i32) -> (i32, i32) {
    %c0_i32 = arith.constant 0 : i32
    %c0_i32_0 = arith.constant 0 : i32
    %c0_i32_1 = arith.constant 0 : i32
    return %c0_i32, %c0_i32_0 : i32, i32
  }
  func.func @transform_2(%arg0: i32) -> (i32, i32, i32) {
    %c0_i32 = arith.constant 0 : i32
    %c0_i32_0 = arith.constant 0 : i32
    %c0_i32_1 = arith.constant 0 : i32
    return %arg0, %c0_i32, %c0_i32_0 : i32, i32, i32
  }
}

</mosaic_0001>

<llo_original>
// kernel: _critic_forward.1
$region0: #{_critic_forward.1}
  #allocation0 [shape = 'u32[]', space=smem, size = 0x4, offset = 0x4, fixed_abs, tag = 'smem constant byte address 0x4 - core index']
  #allocation1 [shape = 'u32[144,128]{1,0:T(1,128)}', space=vmem, size = 0x12000, scoped, tag = 'internal scratch']
  %s0 = inlined_call_operand.vmem [shape: f32[128,24], index: 0, kind: input, shape index: {}]
  %s1 = inlined_call_operand.vmem [shape: f32[168,128], index: 1, kind: input, shape index: {}]
  %s2 = inlined_call_operand.vmem [shape: f32[1,1,128], index: 2, kind: output, shape index: {}]
  %s3 = sld [smem:[#allocation0]]
  $region18: #{_critic_forward.1} parent=0
    _
  %s5 = ssub.s32 1, %s3
  %s6 = scalar_select 0, %s5, %s3
  // Predicated region
  $region2: #{_critic_forward.1} parent=0 // pred_check
    _
  $region3: #{_critic_forward.1} parent=0 // pred_check_branch
    %8 = sbr.rel (0) target = $region5
  $region4: #{_critic_forward.1} parent=0 // pred_region
    _
  $region5: #{_critic_forward.1} parent=0 // pred_fallthru
    _
  // Predicated region
  $region6: #{_critic_forward.1} parent=0 // pred_check
    _
  $region7: #{_critic_forward.1} parent=0 // pred_check_branch
    %10 = sbr.rel (0) target = $region9
  $region8: #{_critic_forward.1} parent=0 // pred_region
    _
  $region9: #{_critic_forward.1} parent=0 // pred_fallthru
    _
  %v11 = vld [vmem:[%s0] sm:$0xff]
  %v12 = vld [vmem:[%s0 + $0x8] sm:$0xff]
  %v13 = vld [vmem:[%s0 + $0x10] sm:$0xff]
  %v14 = vld [vmem:[%s0 + $0x18] sm:$0xff]
  %v15 = vld [vmem:[%s0 + $0x20] sm:$0xff]
  %v16 = vld [vmem:[%s0 + $0x28] sm:$0xff]
  %v17 = vld [vmem:[%s0 + $0x30] sm:$0xff]
  %v18 = vld [vmem:[%s0 + $0x38] sm:$0xff]
  %v19 = vld [vmem:[%s0 + $0x40] sm:$0xff]
  %v20 = vld [vmem:[%s0 + $0x48] sm:$0xff]
  %v21 = vld [vmem:[%s0 + $0x50] sm:$0xff]
  %v22 = vld [vmem:[%s0 + $0x58] sm:$0xff]
  %v23 = vld [vmem:[%s0 + $0x60] sm:$0xff]
  %v24 = vld [vmem:[%s0 + $0x68] sm:$0xff]
  %v25 = vld [vmem:[%s0 + $0x70] sm:$0xff]
  %v26 = vld [vmem:[%s0 + $0x78] sm:$0xff]
  %v27 = vld [vmem:[%s1] sm:$0xff]
  %v28 = vld [vmem:[%s1 + $0x8] sm:$0xff]
  %v29 = vld [vmem:[%s1 + $0x10] sm:$0xff]
  %v30 = vld [vmem:[%s1 + $0x18] sm:$0xff]
  %v31 = vld [vmem:[%s1 + $0x20] sm:$0xff]
  %v32 = vld [vmem:[%s1 + $0x28] sm:$0xff]
  %v33 = vld [vmem:[%s1 + $0x30] sm:$0xff]
  %v34 = vld [vmem:[%s1 + $0x38] sm:$0xff]
  %v35 = vld [vmem:[%s1 + $0x40] sm:$0xff]
  %v36 = vld [vmem:[%s1 + $0x48] sm:$0xff]
  %v37 = vld [vmem:[%s1 + $0x50] sm:$0xff]
  %v38 = vld [vmem:[%s1 + $0x58] sm:$0xff]
  %v39 = vld [vmem:[%s1 + $0x60] sm:$0xff]
  %v40 = vld [vmem:[%s1 + $0x68] sm:$0xff]
  %v41 = vld [vmem:[%s1 + $0x70] sm:$0xff]
  %v42 = vld [vmem:[%s1 + $0x78] sm:$0xff]
  %v43 = vld [vmem:[%s1 + $0x80] sm:$0xff]
  %v44 = vld [vmem:[%s1 + $0x88] sm:$0xff]
  %v45 = vld [vmem:[%s1 + $0x90] sm:$0xff]
  %v46 = vld [vmem:[%s1 + $0x98] sm:$0x1]
  %v47 = vld [vmem:[%s1 + $0x99] sm:$0x1]
  %v48 = vld [vmem:[%s1 + $0x9a] sm:$0x1]
  %v49 = vld [vmem:[%s1 + $0xa0] sm:$0xff]
  %v50 = vlaneseq
  %v51 = vshrl.u32 %v50, 7
  %v52 = vsub.s32 0, %v51
  %v53 = vrot.slane %v46, %v52
  %vm54 = vcmask 195584
  %v56 = vsel %vm54, %v11, 0
  %v59 = vsel %vm54, %v12, 0
  %v62 = vsel %vm54, %v13, 0
  %v65 = vsel %vm54, %v14, 0
  %v68 = vsel %vm54, %v15, 0
  %v71 = vsel %vm54, %v16, 0
  %v74 = vsel %vm54, %v17, 0
  %v77 = vsel %vm54, %v18, 0
  %v80 = vsel %vm54, %v19, 0
  %v83 = vsel %vm54, %v20, 0
  %v86 = vsel %vm54, %v21, 0
  %v89 = vsel %vm54, %v22, 0
  %v92 = vsel %vm54, %v23, 0
  %v95 = vsel %vm54, %v24, 0
  %v98 = vsel %vm54, %v25, 0
  %v101 = vsel %vm54, %v26, 0
  %103 = vmatprep.subr.mxu0 0.0
  %104 = vmatpush1.msra.mxu0 0.0
  %105 = vmatprep.subr.mxu0 0.0
  %106 = vmatpush1.msra.mxu0 0.0
  %107 = vmatprep.subr.mxu0 0.0
  %108 = vmatpush1.msra.mxu0 0.0
  %109 = vmatprep.subr.mxu0 0.0
  %110 = vmatpush1.msra.mxu0 0.0
  %111 = vmatprep.subr.mxu0 0.0
  %112 = vmatpush1.msra.mxu0 0.0
  %113 = vmatprep.subr.mxu0 0.0
  %114 = vmatpush1.msra.mxu0 0.0
  %115 = vmatprep.subr.mxu0 0.0
  %116 = vmatpush1.msra.mxu0 0.0
  %117 = vmatprep.subr.mxu0 0.0
  %118 = vmatpush1.msra.mxu0 0.0
  %119 = vmatprep.subr.mxu0 0.0
  %120 = vmatpush1.msra.mxu0 0.0
  %121 = vmatprep.subr.mxu0 0.0
  %122 = vmatpush1.msra.mxu0 0.0
  %123 = vmatprep.subr.mxu0 0.0
  %124 = vmatpush1.msra.mxu0 0.0
  %125 = vmatprep.subr.mxu0 0.0
  %126 = vmatpush1.msra.mxu0 0.0
  %127 = vmatprep.subr.mxu0 0.0
  %128 = vmatpush1.msra.mxu0 0.0
  %129 = vmatprep.subr.mxu0 0.0
  %130 = vmatpush1.msra.mxu0 %v29
  %131 = vmatprep.subr.mxu0 0.0
  %132 = vmatpush1.msra.mxu0 %v28
  %133 = vmatprep.subr.mxu0 0.0
  %134 = vmatpush1.msra.mxu0 %v27
  %135 = vmatprep.subr.mxu0 0.0
  %136 = vmatpush2.msra.mxu0 0.0
  %137 = vmatprep.subr.mxu0 0.0
  %138 = vmatpush2.msra.mxu0 0.0
  %139 = vmatprep.subr.mxu0 0.0
  %140 = vmatpush2.msra.mxu0 0.0
  %141 = vmatprep.subr.mxu0 0.0
  %142 = vmatpush2.msra.mxu0 0.0
  %143 = vmatprep.subr.mxu0 0.0
  %144 = vmatpush2.msra.mxu0 0.0
  %145 = vmatprep.subr.mxu0 0.0
  %146 = vmatpush2.msra.mxu0 0.0
  %147 = vmatprep.subr.mxu0 0.0
  %148 = vmatpush2.msra.mxu0 0.0
  %149 = vmatprep.subr.mxu0 0.0
  %150 = vmatpush2.msra.mxu0 0.0
  %151 = vmatprep.subr.mxu0 0.0
  %152 = vmatpush2.msra.mxu0 0.0
  %153 = vmatprep.subr.mxu0 0.0
  %154 = vmatpush2.msra.mxu0 0.0
  %155 = vmatprep.subr.mxu0 0.0
  %156 = vmatpush2.msra.mxu0 0.0
  %157 = vmatprep.subr.mxu0 0.0
  %158 = vmatpush2.msra.mxu0 0.0
  %159 = vmatprep.subr.mxu0 0.0
  %160 = vmatpush2.msra.mxu0 0.0
  %161 = vmatprep.subr.mxu0 0.0
  %162 = vmatpush2.msra.mxu0 0.0
  %163 = vmatprep.subr.mxu0 0.0
  %164 = vmatpush2.msra.mxu0 0.0
  %165 = vmatprep.subr.mxu0 0.0
  %166 = vmatpush2.msra.mxu0 0.0
  %167 = vmatprep.mubr.f32.mxu0 0.0
  %168 = vmatmul.mubr.f32.gmra.mxu0 %v56
  %v169 = vpop.f32.mrf.mxu0
  %v170 = vadd.f32 %v53, %v169
  %v171 = vpop.f32.mrf.mxu0
  %172 = vmatprep.mubr.f32.mxu0 0.0
  %173 = vmatmul.mubr.f32.gmra.mxu0 %v59
  %v174 = vpop.f32.mrf.mxu0
  %v175 = vadd.f32 %v53, %v174
  %v176 = vpop.f32.mrf.mxu0
  %177 = vmatprep.mubr.f32.mxu0 0.0
  %178 = vmatmul.mubr.f32.gmra.mxu0 %v62
  %v179 = vpop.f32.mrf.mxu0
  %v180 = vadd.f32 %v53, %v179
  %v181 = vpop.f32.mrf.mxu0
  %182 = vmatprep.mubr.f32.mxu0 0.0
  %183 = vmatmul.mubr.f32.gmra.mxu0 %v65
  %v184 = vpop.f32.mrf.mxu0
  %v185 = vadd.f32 %v53, %v184
  %v186 = vpop.f32.mrf.mxu0
  %187 = vmatprep.mubr.f32.mxu0 0.0
  %188 = vmatmul.mubr.f32.gmra.mxu0 %v68
  %v189 = vpop.f32.mrf.mxu0
  %v190 = vadd.f32 %v53, %v189
  %v191 = vpop.f32.mrf.mxu0
  %192 = vmatprep.mubr.f32.mxu0 0.0
  %193 = vmatmul.mubr.f32.gmra.mxu0 %v71
  %v194 = vpop.f32.mrf.mxu0
  %v195 = vadd.f32 %v53, %v194
  %v196 = vpop.f32.mrf.mxu0
  %197 = vmatprep.mubr.f32.mxu0 0.0
  %198 = vmatmul.mubr.f32.gmra.mxu0 %v74
  %v199 = vpop.f32.mrf.mxu0
  %v200 = vadd.f32 %v53, %v199
  %v201 = vpop.f32.mrf.mxu0
  %202 = vmatprep.mubr.f32.mxu0 0.0
  %203 = vmatmul.mubr.f32.gmra.mxu0 %v77
  %v204 = vpop.f32.mrf.mxu0
  %v205 = vadd.f32 %v53, %v204
  %v206 = vpop.f32.mrf.mxu0
  %207 = vmatprep.mubr.f32.mxu0 0.0
  %208 = vmatmul.mubr.f32.gmra.mxu0 %v80
  %v209 = vpop.f32.mrf.mxu0
  %v210 = vadd.f32 %v53, %v209
  %v211 = vpop.f32.mrf.mxu0
  %212 = vmatprep.mubr.f32.mxu0 0.0
  %213 = vmatmul.mubr.f32.gmra.mxu0 %v83
  %v214 = vpop.f32.mrf.mxu0
  %v215 = vadd.f32 %v53, %v214
  %v216 = vpop.f32.mrf.mxu0
  %217 = vmatprep.mubr.f32.mxu0 0.0
  %218 = vmatmul.mubr.f32.gmra.mxu0 %v86
  %v219 = vpop.f32.mrf.mxu0
  %v220 = vadd.f32 %v53, %v219
  %v221 = vpop.f32.mrf.mxu0
  %222 = vmatprep.mubr.f32.mxu0 0.0
  %223 = vmatmul.mubr.f32.gmra.mxu0 %v89
  %v224 = vpop.f32.mrf.mxu0
  %v225 = vadd.f32 %v53, %v224
  %v226 = vpop.f32.mrf.mxu0
  %227 = vmatprep.mubr.f32.mxu0 0.0
  %228 = vmatmul.mubr.f32.gmra.mxu0 %v92
  %v229 = vpop.f32.mrf.mxu0
  %v230 = vadd.f32 %v53, %v229
  %v231 = vpop.f32.mrf.mxu0
  %232 = vmatprep.mubr.f32.mxu0 0.0
  %233 = vmatmul.mubr.f32.gmra.mxu0 %v95
  %v234 = vpop.f32.mrf.mxu0
  %v235 = vadd.f32 %v53, %v234
  %v236 = vpop.f32.mrf.mxu0
  %237 = vmatprep.mubr.f32.mxu0 0.0
  %238 = vmatmul.mubr.f32.gmra.mxu0 %v98
  %v239 = vpop.f32.mrf.mxu0
  %v240 = vadd.f32 %v53, %v239
  %v241 = vpop.f32.mrf.mxu0
  %242 = vmatprep.mubr.f32.mxu0 0.0
  %243 = vmatmul.mubr.f32.gmra.mxu0 %v101
  %v244 = vpop.f32.mrf.mxu0
  %v245 = vadd.f32 %v53, %v244
  %v246 = vpop.f32.mrf.mxu0
  %247 = vdwg.mxu0
  %v248 = vmax.f32 %v170, 0.0
  %v249 = vmax.f32 %v175, 0.0
  %v250 = vmax.f32 %v180, 0.0
  %v251 = vmax.f32 %v185, 0.0
  %v252 = vmax.f32 %v190, 0.0
  %v253 = vmax.f32 %v195, 0.0
  %v254 = vmax.f32 %v200, 0.0
  %v255 = vmax.f32 %v205, 0.0
  %v256 = vmax.f32 %v210, 0.0
  %v257 = vmax.f32 %v215, 0.0
  %v258 = vmax.f32 %v220, 0.0
  %v259 = vmax.f32 %v225, 0.0
  %v260 = vmax.f32 %v230, 0.0
  %v261 = vmax.f32 %v235, 0.0
  %v262 = vmax.f32 %v240, 0.0
  %v263 = vmax.f32 %v245, 0.0
  %v264 = vlaneseq
  %v265 = vshrl.u32 %v264, 7
  %v266 = vsub.s32 0, %v265
  %v267 = vrot.slane %v47, %v266
  %268 = vmatprep.subr.mxu0 0.0
  %269 = vmatpush1.msra.mxu0 %v45
  %270 = vmatprep.subr.mxu0 0.0
  %271 = vmatpush1.msra.mxu0 %v44
  %272 = vmatprep.subr.mxu0 0.0
  %273 = vmatpush1.msra.mxu0 %v43
  %274 = vmatprep.subr.mxu0 0.0
  %275 = vmatpush1.msra.mxu0 %v42
  %276 = vmatprep.subr.mxu0 0.0
  %277 = vmatpush1.msra.mxu0 %v41
  %278 = vmatprep.subr.mxu0 0.0
  %279 = vmatpush1.msra.mxu0 %v40
  %280 = vmatprep.subr.mxu0 0.0
  %281 = vmatpush1.msra.mxu0 %v39
  %282 = vmatprep.subr.mxu0 0.0
  %283 = vmatpush1.msra.mxu0 %v38
  %284 = vmatprep.subr.mxu0 0.0
  %285 = vmatpush1.msra.mxu0 %v37
  %286 = vmatprep.subr.mxu0 0.0
  %287 = vmatpush1.msra.mxu0 %v36
  %288 = vmatprep.subr.mxu0 0.0
  %289 = vmatpush1.msra.mxu0 %v35
  %290 = vmatprep.subr.mxu0 0.0
  %291 = vmatpush1.msra.mxu0 %v34
  %292 = vmatprep.subr.mxu0 0.0
  %293 = vmatpush1.msra.mxu0 %v33
  %294 = vmatprep.subr.mxu0 0.0
  %295 = vmatpush1.msra.mxu0 %v32
  %296 = vmatprep.subr.mxu0 0.0
  %297 = vmatpush1.msra.mxu0 %v31
  %298 = vmatprep.subr.mxu0 0.0
  %299 = vmatpush1.msra.mxu0 %v30
  %300 = vmatprep.subr.mxu0 0.0
  %301 = vmatpush2.msra.mxu0 0.0
  %302 = vmatprep.subr.mxu0 0.0
  %303 = vmatpush2.msra.mxu0 0.0
  %304 = vmatprep.subr.mxu0 0.0
  %305 = vmatpush2.msra.mxu0 0.0
  %306 = vmatprep.subr.mxu0 0.0
  %307 = vmatpush2.msra.mxu0 0.0
  %308 = vmatprep.subr.mxu0 0.0
  %309 = vmatpush2.msra.mxu0 0.0
  %310 = vmatprep.subr.mxu0 0.0
  %311 = vmatpush2.msra.mxu0 0.0
  %312 = vmatprep.subr.mxu0 0.0
  %313 = vmatpush2.msra.mxu0 0.0
  %314 = vmatprep.subr.mxu0 0.0
  %315 = vmatpush2.msra.mxu0 0.0
  %316 = vmatprep.subr.mxu0 0.0
  %317 = vmatpush2.msra.mxu0 0.0
  %318 = vmatprep.subr.mxu0 0.0
  %319 = vmatpush2.msra.mxu0 0.0
  %320 = vmatprep.subr.mxu0 0.0
  %321 = vmatpush2.msra.mxu0 0.0
  %322 = vmatprep.subr.mxu0 0.0
  %323 = vmatpush2.msra.mxu0 0.0
  %324 = vmatprep.subr.mxu0 0.0
  %325 = vmatpush2.msra.mxu0 0.0
  %326 = vmatprep.subr.mxu0 0.0
  %327 = vmatpush2.msra.mxu0 0.0
  %328 = vmatprep.subr.mxu0 0.0
  %329 = vmatpush2.msra.mxu0 0.0
  %330 = vmatprep.subr.mxu0 0.0
  %331 = vmatpush2.msra.mxu0 0.0
  %332 = vmatprep.mubr.f32.mxu0 0.0
  %333 = vmatmul.mubr.f32.gmra.mxu0 %v248
  %v334 = vpop.f32.mrf.mxu0
  %v335 = vadd.f32 %v267, %v334
  %v336 = vpop.f32.mrf.mxu0
  %337 = vmatprep.mubr.f32.mxu0 0.0
  %338 = vmatmul.mubr.f32.gmra.mxu0 %v249
  %v339 = vpop.f32.mrf.mxu0
  %v340 = vadd.f32 %v267, %v339
  %v341 = vpop.f32.mrf.mxu0
  %342 = vmatprep.mubr.f32.mxu0 0.0
  %343 = vmatmul.mubr.f32.gmra.mxu0 %v250
  %v344 = vpop.f32.mrf.mxu0
  %v345 = vadd.f32 %v267, %v344
  %v346 = vpop.f32.mrf.mxu0
  %347 = vmatprep.mubr.f32.mxu0 0.0
  %348 = vmatmul.mubr.f32.gmra.mxu0 %v251
  %v349 = vpop.f32.mrf.mxu0
  %v350 = vadd.f32 %v267, %v349
  %v351 = vpop.f32.mrf.mxu0
  %352 = vmatprep.mubr.f32.mxu0 0.0
  %353 = vmatmul.mubr.f32.gmra.mxu0 %v252
  %v354 = vpop.f32.mrf.mxu0
  %v355 = vadd.f32 %v267, %v354
  %v356 = vpop.f32.mrf.mxu0
  %357 = vmatprep.mubr.f32.mxu0 0.0
  %358 = vmatmul.mubr.f32.gmra.mxu0 %v253
  %v359 = vpop.f32.mrf.mxu0
  %v360 = vadd.f32 %v267, %v359
  %v361 = vpop.f32.mrf.mxu0
  %362 = vmatprep.mubr.f32.mxu0 0.0
  %363 = vmatmul.mubr.f32.gmra.mxu0 %v254
  %v364 = vpop.f32.mrf.mxu0
  %v365 = vadd.f32 %v267, %v364
  %v366 = vpop.f32.mrf.mxu0
  %367 = vmatprep.mubr.f32.mxu0 0.0
  %368 = vmatmul.mubr.f32.gmra.mxu0 %v255
  %v369 = vpop.f32.mrf.mxu0
  %v370 = vadd.f32 %v267, %v369
  %v371 = vpop.f32.mrf.mxu0
  %372 = vmatprep.mubr.f32.mxu0 0.0
  %373 = vmatmul.mubr.f32.gmra.mxu0 %v256
  %v374 = vpop.f32.mrf.mxu0
  %v375 = vadd.f32 %v267, %v374
  %v376 = vpop.f32.mrf.mxu0
  %377 = vmatprep.mubr.f32.mxu0 0.0
  %378 = vmatmul.mubr.f32.gmra.mxu0 %v257
  %v379 = vpop.f32.mrf.mxu0
  %v380 = vadd.f32 %v267, %v379
  %v381 = vpop.f32.mrf.mxu0
  %382 = vmatprep.mubr.f32.mxu0 0.0
  %383 = vmatmul.mubr.f32.gmra.mxu0 %v258
  %v384 = vpop.f32.mrf.mxu0
  %v385 = vadd.f32 %v267, %v384
  %v386 = vpop.f32.mrf.mxu0
  %387 = vmatprep.mubr.f32.mxu0 0.0
  %388 = vmatmul.mubr.f32.gmra.mxu0 %v259
  %v389 = vpop.f32.mrf.mxu0
  %v390 = vadd.f32 %v267, %v389
  %v391 = vpop.f32.mrf.mxu0
  %392 = vmatprep.mubr.f32.mxu0 0.0
  %393 = vmatmul.mubr.f32.gmra.mxu0 %v260
  %v394 = vpop.f32.mrf.mxu0
  %v395 = vadd.f32 %v267, %v394
  %v396 = vpop.f32.mrf.mxu0
  %397 = vmatprep.mubr.f32.mxu0 0.0
  %398 = vmatmul.mubr.f32.gmra.mxu0 %v261
  %v399 = vpop.f32.mrf.mxu0
  %v400 = vadd.f32 %v267, %v399
  %v401 = vpop.f32.mrf.mxu0
  %402 = vmatprep.mubr.f32.mxu0 0.0
  %403 = vmatmul.mubr.f32.gmra.mxu0 %v262
  %v404 = vpop.f32.mrf.mxu0
  %v405 = vadd.f32 %v267, %v404
  %v406 = vpop.f32.mrf.mxu0
  %407 = vmatprep.mubr.f32.mxu0 0.0
  %408 = vmatmul.mubr.f32.gmra.mxu0 %v263
  %v409 = vpop.f32.mrf.mxu0
  %v410 = vadd.f32 %v267, %v409
  %v411 = vpop.f32.mrf.mxu0
  %412 = vdwg.mxu0
  %v413 = vmax.f32 %v335, 0.0
  %v414 = vmax.f32 %v340, 0.0
  %v415 = vmax.f32 %v345, 0.0
  %v416 = vmax.f32 %v350, 0.0
  %v417 = vmax.f32 %v355, 0.0
  %v418 = vmax.f32 %v360, 0.0
  %v419 = vmax.f32 %v365, 0.0
  %v420 = vmax.f32 %v370, 0.0
  %v421 = vmax.f32 %v375, 0.0
  %v422 = vmax.f32 %v380, 0.0
  %v423 = vmax.f32 %v385, 0.0
  %v424 = vmax.f32 %v390, 0.0
  %v425 = vmax.f32 %v395, 0.0
  %v426 = vmax.f32 %v400, 0.0
  %v427 = vmax.f32 %v405, 0.0
  %v428 = vmax.f32 %v410, 0.0
  %429 = vmatprep.subr.mxu0 0.0
  %430 = vmatpush1.xpose.msra.mxu0 %v428
  %431 = vmatprep.subr.mxu0 0.0
  %432 = vmatpush1.xpose.msra.mxu0 %v427
  %433 = vmatprep.subr.mxu0 0.0
  %434 = vmatpush1.xpose.msra.mxu0 %v426
  %435 = vmatprep.subr.mxu0 0.0
  %436 = vmatpush1.xpose.msra.mxu0 %v425
  %437 = vmatprep.subr.mxu0 0.0
  %438 = vmatpush1.xpose.msra.mxu0 %v424
  %439 = vmatprep.subr.mxu0 0.0
  %440 = vmatpush1.xpose.msra.mxu0 %v423
  %441 = vmatprep.subr.mxu0 0.0
  %442 = vmatpush1.xpose.msra.mxu0 %v422
  %443 = vmatprep.subr.mxu0 0.0
  %444 = vmatpush1.xpose.msra.mxu0 %v421
  %445 = vmatprep.subr.mxu0 0.0
  %446 = vmatpush1.xpose.msra.mxu0 %v420
  %447 = vmatprep.subr.mxu0 0.0
  %448 = vmatpush1.xpose.msra.mxu0 %v419
  %449 = vmatprep.subr.mxu0 0.0
  %450 = vmatpush1.xpose.msra.mxu0 %v418
  %451 = vmatprep.subr.mxu0 0.0
  %452 = vmatpush1.xpose.msra.mxu0 %v417
  %453 = vmatprep.subr.mxu0 0.0
  %454 = vmatpush1.xpose.msra.mxu0 %v416
  %455 = vmatprep.subr.mxu0 0.0
  %456 = vmatpush1.xpose.msra.mxu0 %v415
  %457 = vmatprep.subr.mxu0 0.0
  %458 = vmatpush1.xpose.msra.mxu0 %v414
  %459 = vmatprep.subr.mxu0 0.0
  %460 = vmatpush1.xpose.msra.mxu0 %v413
  %461 = vmatprep.subr.mxu0 0.0
  %462 = vmatpush2.xpose.msra.mxu0 0.0
  %463 = vmatprep.subr.mxu0 0.0
  %464 = vmatpush2.xpose.msra.mxu0 0.0
  %465 = vmatprep.subr.mxu0 0.0
  %466 = vmatpush2.xpose.msra.mxu0 0.0
  %467 = vmatprep.subr.mxu0 0.0
  %468 = vmatpush2.xpose.msra.mxu0 0.0
  %469 = vmatprep.subr.mxu0 0.0
  %470 = vmatpush2.xpose.msra.mxu0 0.0
  %471 = vmatprep.subr.mxu0 0.0
  %472 = vmatpush2.xpose.msra.mxu0 0.0
  %473 = vmatprep.subr.mxu0 0.0
  %474 = vmatpush2.xpose.msra.mxu0 0.0
  %475 = vmatprep.subr.mxu0 0.0
  %476 = vmatpush2.xpose.msra.mxu0 0.0
  %477 = vmatprep.subr.mxu0 0.0
  %478 = vmatpush2.xpose.msra.mxu0 0.0
  %479 = vmatprep.subr.mxu0 0.0
  %480 = vmatpush2.xpose.msra.mxu0 0.0
  %481 = vmatprep.subr.mxu0 0.0
  %482 = vmatpush2.xpose.msra.mxu0 0.0
  %483 = vmatprep.subr.mxu0 0.0
  %484 = vmatpush2.xpose.msra.mxu0 0.0
  %485 = vmatprep.subr.mxu0 0.0
  %486 = vmatpush2.xpose.msra.mxu0 0.0
  %487 = vmatprep.subr.mxu0 0.0
  %488 = vmatpush2.xpose.msra.mxu0 0.0
  %489 = vmatprep.subr.mxu0 0.0
  %490 = vmatpush2.xpose.msra.mxu0 0.0
  %491 = vmatprep.subr.mxu0 0.0
  %492 = vmatpush2.xpose.msra.mxu0 0.0
  %493 = vmatprep.mubr.f32.mxu0 0.0
  %494 = vmatmul.mubr.f32.gmra.mxu0 %v49
  %v495 = vpop.f32.mrf.mxu0
  %v496 = vadd.f32 0.0, %v495
  %v497 = vpop.f32.mrf.mxu0
  %498 = vdwg.mxu0
  %500 = vset.pattern.permute.xlu0 0
  %501 = vperm.xlu0 %500, %v48
  %v502 = vpop.permute.xlu0 %501
  %v504 = vadd.f32 %v496, %v502
  %505 = vst [vmem:[%s2] sm:$0x1] %v504
  // Predicated region
  $region10: #{_critic_forward.1} parent=0 // pred_check
    _
  $region11: #{_critic_forward.1} parent=0 // pred_check_branch
    %507 = sbr.rel (0) target = $region13
  $region12: #{_critic_forward.1} parent=0 // pred_region
    _
  $region13: #{_critic_forward.1} parent=0 // pred_fallthru
    _
  // Predicated region
  $region14: #{_critic_forward.1} parent=0 // pred_check
    _
  $region15: #{_critic_forward.1} parent=0 // pred_check_branch
    %509 = sbr.rel (0) target = $region17
  $region16: #{_critic_forward.1} parent=0 // pred_region
    _
  $region17: #{_critic_forward.1} parent=0 // pred_fallthru
    _

</llo_original>
